<compile_context>
chip_gen: v5e
topology: v5e:2x2
jax: 0.10.0
libtpu: 0.0.40
codegen_flags: <defaults>
</compile_context>

<pallas_src>
import jax
import jax.numpy as jnp
import numpy as np
from jax.experimental import pallas as pl
from jax.experimental.pallas import tpu as pltpu


def _round_up(x, m):
    return ((x + m - 1) // m) * m


def _pick_batch_tile(B, C, S, Ep, Qp):
    """Largest batch tile that fits a conservative VMEM budget, preferring at
    least 2 grid steps so the 'parallel' axis can shard across TensorCores."""
    def vmem_bytes(tb):
        return (2 * tb * C * S * 4              # f32 img tile, double-buffered
                + 2 * tb * Qp * 4               # f32 output tile, double-buffered
                + 2 * (C * Ep + Ep * Qp) * 2    # bf16 weights (double-buffered)
                + 2 * (Ep + Qp) * 4 * 2)        # f32 biases (double-buffered)

    VMEM_BUDGET = 32 * 1024 * 1024              # conservative: fits all gens
    if B <= 8:
        return B
    cap = max(8, _round_up(pl.cdiv(B, 2), 8))   # keep >= 2 grid steps
    tb = 8
    for cand in (1024, 512, 256, 128, 64, 32, 16, 8):
        if cand <= cap and vmem_bytes(cand) <= VMEM_BUDGET:
            tb = cand
            break
    return tb


def inverse_quantity_kernel(img_ref, w_enc_ref, b_enc_ref, w_q_ref, b_q_ref,
                            pred_ref):
    # Global average pool over spatial dims: f32 lane reduce on the XLU
    # (a free slot in this HBM-bound kernel), then cast to bf16 for the MXU.
    pooled = jnp.mean(img_ref[...], axis=-1)                      # [TB, C] f32

    # Image encoder: Linear(C, E) + bias + ReLU (bf16 MXU, f32 accumulation).
    emb = jnp.dot(pooled.astype(jnp.bfloat16), w_enc_ref[...],
                  preferred_element_type=jnp.float32)             # [TB, Ep]
    emb = jnp.maximum(emb + b_enc_ref[...], 0.0)

    # Quantity head: Linear(E, Q) (bf16 MXU, lane-dense padded output store).
    pred_ref[...] = (jnp.dot(emb.astype(jnp.bfloat16), w_q_ref[...],
                             preferred_element_type=jnp.float32)
                     + b_q_ref[...])                              # [TB, Qp]


@jax.jit
def inverse_quantity_forward(img, w_enc, b_enc, w_q, b_q, quantity_gt):
    B, C, H, W = img.shape
    S = H * W
    E = w_enc.shape[1]
    Q = w_q.shape[1]

    # ---- layout glue (cheap; the image itself is only reshaped, never copied) --
    Ep = _round_up(E, 128)
    Qp = _round_up(Q, 128)
    TB = _pick_batch_tile(B, C, S, Ep, Qp)
    grid_b = pl.cdiv(B, TB)

    img3d = img.reshape(B, C, S)                                   # f32 view

    w_enc_p = jnp.pad(w_enc, ((0, 0), (0, Ep - E))).astype(jnp.bfloat16)
    b_enc_p = jnp.pad(b_enc.astype(jnp.float32), ((0, 0), (0, Ep - E)))
    w_q_p = jnp.pad(w_q, ((0, Ep - E), (0, Qp - Q))).astype(jnp.bfloat16)
    b_q_p = jnp.pad(b_q.astype(jnp.float32), ((0, 0), (0, Qp - Q)))

    pred_pad = pl.pallas_call(
        inverse_quantity_kernel,
        out_shape=jax.ShapeDtypeStruct((B, Qp), jnp.float32),
        grid=(grid_b,),
        in_specs=[
            pl.BlockSpec((TB, C, S), lambda i: (i, 0, 0)),   # img tile (pipelined)
            pl.BlockSpec((C, Ep), lambda i: (0, 0)),         # resident tiny weights
            pl.BlockSpec((1, Ep), lambda i: (0, 0)),
            pl.BlockSpec((Ep, Qp), lambda i: (0, 0)),
            pl.BlockSpec((1, Qp), lambda i: (0, 0)),
        ],
        out_specs=pl.BlockSpec((TB, Qp), lambda i: (i, 0)),
        compiler_params=pltpu.CompilerParams(
            dimension_semantics=("parallel",),
            vmem_limit_bytes=48 * 1024 * 1024),
    )(img3d, w_enc_p, b_enc_p, w_q_p, b_q_p)

    pred = pred_pad[:, :Q]

    # ---- weighted masked-MSE quantity loss (needs batch-global reductions,
    #      so it is finalized here rather than inside the batch-tiled kernel) --
    gt = quantity_gt.astype(jnp.float32)
    nonzero_mask = (gt > 0).astype(jnp.float32)
    mask_sum = nonzero_mask.sum(axis=1)
    example_weights = mask_sum / (mask_sum.mean() + 1e-8)
    q_loss = ((pred - gt) ** 2 * nonzero_mask).sum(axis=1) / (mask_sum + 1e-8)
    q_loss = q_loss * example_weights
    q_loss = jnp.where(jnp.sum(gt) == 0.0, 0.0, q_loss)    # no_quantity branch
    quantity_loss = q_loss.mean()

    return {"quantity": pred, "quantity_loss": quantity_loss}


def _reference(img, w_enc, b_enc, w_q, b_q, gt, mixed_precision):
    B, C, H, W = img.shape
    pooled = img.reshape(B, C, H * W).mean(axis=-1)                # f32 pool
    if mixed_precision:
        # Same rounding points as the kernel: f32 pool, bf16 MXU operands,
        # f32 accumulation.
        f = lambda x: x.astype(jnp.bfloat16).astype(jnp.float32)
        emb = jnp.maximum(f(pooled) @ f(w_enc) + b_enc, 0.0)
        pred = f(emb) @ f(w_q) + b_q
    else:
        emb = jnp.maximum(pooled @ w_enc + b_enc, 0.0)
        pred = emb @ w_q + b_q
    mask = (gt > 0).astype(jnp.float32)
    ms = mask.sum(axis=1)
    ew = ms / (ms.mean() + 1e-8)
    ql = ((pred - gt) ** 2 * mask).sum(axis=1) / (ms + 1e-8)
    ql = ql * ew
    ql = jnp.where(jnp.sum(gt) == 0.0, 0.0, ql)
    return pred, ql.mean()


if __name__ == "__main__":
    B, C, H, W = 2, 4, 16, 16   # NCHW image input
    E, Q = 32, 8                # embedding dim, number of quantities

    key = jax.random.PRNGKey(0)
    k_img, k_we, k_be, k_wq, k_bq, k_gt1, k_gt2 = jax.random.split(key, 7)

    img = jax.random.normal(k_img, (B, C, H, W), dtype=jnp.float32)
    w_enc = jax.random.normal(k_we, (C, E), dtype=jnp.float32) * 0.1
    b_enc = jax.random.normal(k_be, (1, E), dtype=jnp.float32) * 0.01
    w_q = jax.random.normal(k_wq, (E, Q), dtype=jnp.float32) * 0.1
    b_q = jax.random.normal(k_bq, (1, Q), dtype=jnp.float32) * 0.01

    # quantity ground truth with some exact zeros (so the nonzero mask matters)
    gt_vals = jax.random.uniform(k_gt1, (B, Q), dtype=jnp.float32) * 3.0
    gt_keep = jax.random.uniform(k_gt2, (B, Q)) > 0.4
    quantity_gt = jnp.where(gt_keep, gt_vals, 0.0)

    out = inverse_quantity_forward(img, w_enc, b_enc, w_q, b_q, quantity_gt)
    jax.block_until_ready(out)

    # Tight check vs. the same mixed-precision math in plain JAX.
    ref_pred_mx, ref_loss_mx = _reference(img, w_enc, b_enc, w_q, b_q,
                                          quantity_gt, True)
    np.testing.assert_allclose(np.asarray(out["quantity"]),
                               np.asarray(ref_pred_mx), rtol=1e-3, atol=1e-4)
    np.testing.assert_allclose(float(out["quantity_loss"]), float(ref_loss_mx),
                               rtol=1e-3, atol=1e-4)

    # Sanity check vs. the full-f32 torch-faithful reference (bf16 MXU
    # operands trade <~1e-3 relative error for full MXU throughput).
    ref_pred, ref_loss = _reference(img, w_enc, b_enc, w_q, b_q,
                                    quantity_gt, False)
    np.testing.assert_allclose(np.asarray(out["quantity"]),
                               np.asarray(ref_pred), rtol=2e-2, atol=2e-2)
    np.testing.assert_allclose(float(out["quantity_loss"]), float(ref_loss),
                               rtol=2e-2, atol=2e-2)

    print("KERNEL_OK")
</pallas_src>

<mosaic_0001>
module attributes {stable_mosaic.version = 11 : i64} {
  func.func @inverse_quantity_kernel(%arg0: i32, %arg1: memref<2x4x256xf32, #tpu.memory_space<vmem>>, %arg2: memref<4x128xbf16, #tpu.memory_space<vmem>>, %arg3: memref<1x128xf32, #tpu.memory_space<vmem>>, %arg4: memref<128x128xbf16, #tpu.memory_space<vmem>>, %arg5: memref<1x128xf32, #tpu.memory_space<vmem>>, %arg6: memref<2x128xf32, #tpu.memory_space<vmem>>) attributes {dimension_semantics = [#tpu.dimension_semantics<parallel>], iteration_bounds = array<i64: 1>, scalar_prefetch = 0 : i64, scratch_operands = 0 : i64, tpu.core_type = #tpu.core_type<tc>, window_params = [{transform_indices = @transform_0, window_bounds = array<i64: 2, 4, 256>}, {pipeline_mode = #tpu.pipeline_mode<synchronous>, transform_indices = @transform_1, window_bounds = array<i64: 4, 128>}, {pipeline_mode = #tpu.pipeline_mode<synchronous>, transform_indices = @transform_2, window_bounds = array<i64: 1, 128>}, {pipeline_mode = #tpu.pipeline_mode<synchronous>, transform_indices = @transform_3, window_bounds = array<i64: 128, 128>}, {pipeline_mode = #tpu.pipeline_mode<synchronous>, transform_indices = @transform_4, window_bounds = array<i64: 1, 128>}, {transform_indices = @transform_5, window_bounds = array<i64: 2, 128>}]} {
    %c0 = arith.constant 0 : index
    %c0_0 = arith.constant 0 : index
    %c0_1 = arith.constant 0 : index
    %0 = vector.load %arg1[%c0, %c0_0, %c0_1] : memref<2x4x256xf32, #tpu.memory_space<vmem>>, vector<2x4x256xf32>
    %cst = arith.constant dense<0.000000e+00> : vector<2x4xf32>
    %1 = vector.multi_reduction <add>, %0, %cst [2] : vector<2x4x256xf32> to vector<2x4xf32>
    %cst_2 = arith.constant 2.560000e+02 : f32
    %2 = vector.broadcast %cst_2 : f32 to vector<2x4xf32>
    %3 = arith.divf %1, %2 : vector<2x4xf32>
    %4 = arith.truncf %3 : vector<2x4xf32> to vector<2x4xbf16>
    %c0_3 = arith.constant 0 : index
    %c0_4 = arith.constant 0 : index
    %5 = vector.load %arg2[%c0_3, %c0_4] : memref<4x128xbf16, #tpu.memory_space<vmem>>, vector<4x128xbf16>
    %cst_5 = arith.constant dense<0.000000e+00> : vector<2x128xf32>
    %6 = tpu.matmul %4, %5, %cst_5 {dimension_numbers = #tpu.dot_dimension_numbers<[1], [0], [0], [1], [0, 0, 1, 1], [], []>} : vector<2x4xbf16>, vector<4x128xbf16>, vector<2x128xf32> -> vector<2x128xf32>
    %c0_6 = arith.constant 0 : index
    %c0_7 = arith.constant 0 : index
    %7 = vector.load %arg3[%c0_6, %c0_7] : memref<1x128xf32, #tpu.memory_space<vmem>>, vector<1x128xf32>
    %8 = vector.broadcast %7 : vector<1x128xf32> to vector<2x128xf32>
    %9 = arith.addf %6, %8 : vector<2x128xf32>
    %cst_8 = arith.constant 0.000000e+00 : f32
    %10 = vector.broadcast %cst_8 : f32 to vector<2x128xf32>
    %11 = arith.maximumf %9, %10 : vector<2x128xf32>
    %12 = arith.truncf %11 : vector<2x128xf32> to vector<2x128xbf16>
    %c0_9 = arith.constant 0 : index
    %c0_10 = arith.constant 0 : index
    %13 = vector.load %arg4[%c0_9, %c0_10] : memref<128x128xbf16, #tpu.memory_space<vmem>>, vector<128x128xbf16>
    %cst_11 = arith.constant dense<0.000000e+00> : vector<2x128xf32>
    %14 = tpu.matmul %12, %13, %cst_11 {dimension_numbers = #tpu.dot_dimension_numbers<[1], [0], [0], [1], [0, 0, 1, 1], [], []>} : vector<2x128xbf16>, vector<128x128xbf16>, vector<2x128xf32> -> vector<2x128xf32>
    %c0_12 = arith.constant 0 : index
    %c0_13 = arith.constant 0 : index
    %15 = vector.load %arg5[%c0_12, %c0_13] : memref<1x128xf32, #tpu.memory_space<vmem>>, vector<1x128xf32>
    %16 = vector.broadcast %15 : vector<1x128xf32> to vector<2x128xf32>
    %17 = arith.addf %14, %16 : vector<2x128xf32>
    %c0_14 = arith.constant 0 : index
    %c0_15 = arith.constant 0 : index
    %18 = vector.load %arg6[%c0_14, %c0_15] : memref<2x128xf32, #tpu.memory_space<vmem>>, vector<2x128xf32>
    tpu.vector_store %arg6[%c0_14, %c0_15], %17 {strides = array<i32>} : memref<2x128xf32, #tpu.memory_space<vmem>>, vector<2x128xf32>,
    return
  }
  func.func @transform_0(%arg0: i32) -> (i32, i32, i32) {
    %c0_i32 = arith.constant 0 : i32
    %c0_i32_0 = arith.constant 0 : i32
    %c0_i32_1 = arith.constant 0 : i32
    return %arg0, %c0_i32, %c0_i32_0 : i32, i32, i32
  }
  func.func @transform_1(%arg0: i32) -> (i32, i32) {
    %c0_i32 = arith.constant 0 : i32
    %c0_i32_0 = arith.constant 0 : i32
    %c0_i32_1 = arith.constant 0 : i32
    return %c0_i32, %c0_i32_0 : i32, i32
  }
  func.func @transform_2(%arg0: i32) -> (i32, i32) {
    %c0_i32 = arith.constant 0 : i32
    %c0_i32_0 = arith.constant 0 : i32
    %c0_i32_1 = arith.constant 0 : i32
    return %c0_i32, %c0_i32_0 : i32, i32
  }
  func.func @transform_3(%arg0: i32) -> (i32, i32) {
    %c0_i32 = arith.constant 0 : i32
    %c0_i32_0 = arith.constant 0 : i32
    %c0_i32_1 = arith.constant 0 : i32
    return %c0_i32, %c0_i32_0 : i32, i32
  }
  func.func @transform_4(%arg0: i32) -> (i32, i32) {
    %c0_i32 = arith.constant 0 : i32
    %c0_i32_0 = arith.constant 0 : i32
    %c0_i32_1 = arith.constant 0 : i32
    return %c0_i32, %c0_i32_0 : i32, i32
  }
  func.func @transform_5(%arg0: i32) -> (i32, i32) {
    %c0_i32 = arith.constant 0 : i32
    %c0_i32_0 = arith.constant 0 : i32
    return %arg0, %c0_i32 : i32, i32
  }
}

</mosaic_0001>

<llo_original>
// kernel: inverse_quantity_forward.1
$region0: #{inverse_quantity_forward.1}
  #allocation0 [shape = 'u32[]', space=smem, size = 0x4, offset = 0x4, fixed_abs, tag = 'smem constant byte address 0x4 - core index']
  #allocation1 [shape = 'u32[72,128]{1,0:T(1,128)}', space=vmem, size = 0x9000, scoped, tag = 'internal scratch']
  %s0 = inlined_call_operand.vmem [shape: f32[2,4,256], index: 0, kind: input, shape index: {}]
  %s1 = inlined_call_operand.vmem [shape: bf16[4,128], index: 1, kind: input, shape index: {}]
  %s2 = inlined_call_operand.vmem [shape: f32[1,128], index: 2, kind: input, shape index: {}]
  %s3 = inlined_call_operand.vmem [shape: bf16[128,128], index: 3, kind: input, shape index: {}]
  %s4 = inlined_call_operand.vmem [shape: f32[1,128], index: 4, kind: input, shape index: {}]
  %s5 = inlined_call_operand.vmem [shape: f32[2,128], index: 5, kind: output, shape index: {}]
  %s6 = sld [smem:[#allocation0]]
  $region30: #{inverse_quantity_forward.1} parent=0
    _
  %s8 = ssub.s32 1, %s6
  %s9 = scalar_select 0, %s8, %s6
  // Predicated region
  $region2: #{inverse_quantity_forward.1} parent=0 // pred_check
    _
  $region3: #{inverse_quantity_forward.1} parent=0 // pred_check_branch
    %11 = sbr.rel (0) target = $region5
  $region4: #{inverse_quantity_forward.1} parent=0 // pred_region
    _
  $region5: #{inverse_quantity_forward.1} parent=0 // pred_fallthru
    _
  // Predicated region
  $region6: #{inverse_quantity_forward.1} parent=0 // pred_check
    _
  $region7: #{inverse_quantity_forward.1} parent=0 // pred_check_branch
    %13 = sbr.rel (0) target = $region9
  $region8: #{inverse_quantity_forward.1} parent=0 // pred_region
    _
  $region9: #{inverse_quantity_forward.1} parent=0 // pred_fallthru
    _
  // Predicated region
  $region10: #{inverse_quantity_forward.1} parent=0 // pred_check
    _
  $region11: #{inverse_quantity_forward.1} parent=0 // pred_check_branch
    %15 = sbr.rel (0) target = $region13
  $region12: #{inverse_quantity_forward.1} parent=0 // pred_region
    _
  $region13: #{inverse_quantity_forward.1} parent=0 // pred_fallthru
    _
  // Predicated region
  $region14: #{inverse_quantity_forward.1} parent=0 // pred_check
    _
  $region15: #{inverse_quantity_forward.1} parent=0 // pred_check_branch
    %17 = sbr.rel (0) target = $region17
  $region16: #{inverse_quantity_forward.1} parent=0 // pred_region
    _
  $region17: #{inverse_quantity_forward.1} parent=0 // pred_fallthru
    _
  // Predicated region
  $region18: #{inverse_quantity_forward.1} parent=0 // pred_check
    _
  $region19: #{inverse_quantity_forward.1} parent=0 // pred_check_branch
    %19 = sbr.rel (0) target = $region21
  $region20: #{inverse_quantity_forward.1} parent=0 // pred_region
    _
  $region21: #{inverse_quantity_forward.1} parent=0 // pred_fallthru
    _
  %v21 = vld [vmem:[%s0] sm:$0xff]
  %v22 = vld [vmem:[%s0 + $0x8] sm:$0xff]
  %25 = vst [vmem:[#allocation1] ss:$2 sm:$0xff] %v21
  %v26 = vld.sshfl [vmem:[#allocation1] sm:$0xff pattern:$0x75316420]
  %v27 = vld.sshfl [vmem:[#allocation1 + $0x8] sm:$0xff pattern:$0x75316420]
  %s28 = scalar_lea.vmem [#allocation1], 16
  %29 = vst [vmem:[%s28] ss:$2 sm:$0xff] %v22
  %v30 = vld.sshfl [vmem:[#allocation1 + $0x10] sm:$0xff pattern:$0x75316420]
  %v31 = vld.sshfl [vmem:[#allocation1 + $0x18] sm:$0xff pattern:$0x75316420]
  %vm36 = vcmask 1043456
  %v37 = vsel %vm36, %v26, 0.0
  %v38 = vsel %vm36, %v27, 0.0
  %v39 = vadd.f32 %v37, %v38
  %40 = vadd.xlane.f32.xlu0 %v39
  %v41 = vpop.xlane.xlu0 %40
  %v42 = vsel %vm36, %v30, 0.0
  %v43 = vsel %vm36, %v31, 0.0
  %v44 = vadd.f32 %v42, %v43
  %45 = vadd.xlane.f32.xlu0 %v44
  %v46 = vpop.xlane.xlu0 %45
  %v47 = vrcp.pop 256.0
  %v48 = vmul.f32 256.0, %v47
  %v49 = vsub.f32 1.0, %v48
  %v50 = vmul.f32 %v47, %v49
  %v51 = vadd.f32 %v47, %v50
  %vm52 = vweird.f32 %v47
  %v53 = vsel %vm52, %v47, %v51
  %v54 = vmul.f32 %v41, %v53
  %v55 = vmul.f32 %v46, %v53
  %v56 = vpack.c.bf16 %v54, %v54
  %v57 = vpack.c.bf16 %v55, %v55
  %v58 = vld [vmem:[%s1] sm:$0x3]
  %v59 = vld [vmem:[%s2] sm:$0x1]
  %v61 = vperm.slane %v59, 0
  %v65 = vunpack.c.l.b16 %v56
  %v66 = vunpack.c.l.b16 %v57
  %v67 = vlaneseq
  %v68 = vand.u32 %v67, 127
  %v69 = vperm.slane %v65, %v68
  %v70 = vperm.slane %v66, %v68
  %vm71 = vcmask 1041409
  %v72 = vsel %vm71, %v70, %v69
  %v73 = vpack.c.b16 %v72, %v72
  %vm74 = vcmask 31744
  %v76 = vsel %vm74, %v73, 0
  %vm78 = vcmask 1041408
  %v80 = vsel %vm78, %v58, 0
  %82 = vmatpush.bf16.msra.mxu0 0
  %83 = vmatpush.bf16.msra.mxu0 0
  %84 = vmatpush.bf16.msra.mxu0 0
  %85 = vmatpush.bf16.msra.mxu0 0
  %86 = vmatpush.bf16.msra.mxu0 0
  %87 = vmatpush.bf16.msra.mxu0 0
  %88 = vmatpush.bf16.msra.mxu0 0
  %89 = vmatpush.bf16.msra.mxu0 %v80
  %90 = vmatmul.bf16.gmra.mxu0 %v76
  %v91 = vpop.f32.mrf.mxu0
  %v92 = vadd.f32 %v61, %v91
  %v93 = vpop.f32.mrf.mxu0
  %94 = vdwg.mxu0
  %v95 = vmax.f32 %v92, 0.0
  %v96 = vpack.c.bf16 %v95, %v95
  %v97 = vld [vmem:[%s3] sm:$0xf]
  %v98 = vld [vmem:[%s3 + $0x4] sm:$0xf]
  %v99 = vld [vmem:[%s3 + $0x8] sm:$0xf]
  %v100 = vld [vmem:[%s3 + $0xc] sm:$0xf]
  %v101 = vld [vmem:[%s3 + $0x10] sm:$0xf]
  %v102 = vld [vmem:[%s3 + $0x14] sm:$0xf]
  %v103 = vld [vmem:[%s3 + $0x18] sm:$0xf]
  %v104 = vld [vmem:[%s3 + $0x1c] sm:$0xf]
  %v105 = vld [vmem:[%s3 + $0x20] sm:$0xf]
  %v106 = vld [vmem:[%s3 + $0x24] sm:$0xf]
  %v107 = vld [vmem:[%s3 + $0x28] sm:$0xf]
  %v108 = vld [vmem:[%s3 + $0x2c] sm:$0xf]
  %v109 = vld [vmem:[%s3 + $0x30] sm:$0xf]
  %v110 = vld [vmem:[%s3 + $0x34] sm:$0xf]
  %v111 = vld [vmem:[%s3 + $0x38] sm:$0xf]
  %v112 = vld [vmem:[%s3 + $0x3c] sm:$0xf]
  %v113 = vld [vmem:[%s4] sm:$0x1]
  %v115 = vperm.slane %v113, 0
  %v133 = vunpack.c.l.b16 %v97
  %v134 = vunpack.c.l.b16 %v98
  %v135 = vunpack.c.l.b16 %v99
  %v136 = vunpack.c.l.b16 %v100
  %v137 = vunpack.c.l.b16 %v101
  %v138 = vunpack.c.l.b16 %v102
  %v139 = vunpack.c.l.b16 %v103
  %v140 = vunpack.c.l.b16 %v104
  %v141 = vunpack.c.l.b16 %v105
  %v142 = vunpack.c.l.b16 %v106
  %v143 = vunpack.c.l.b16 %v107
  %v144 = vunpack.c.l.b16 %v108
  %v145 = vunpack.c.l.b16 %v109
  %v146 = vunpack.c.l.b16 %v110
  %v147 = vunpack.c.l.b16 %v111
  %v148 = vunpack.c.l.b16 %v112
  %v149 = vpack.c.b16 %v134, %v133
  %v150 = vpack.c.b16 %v136, %v135
  %v151 = vpack.c.b16 %v138, %v137
  %v152 = vpack.c.b16 %v140, %v139
  %v153 = vpack.c.b16 %v142, %v141
  %v154 = vpack.c.b16 %v144, %v143
  %v155 = vpack.c.b16 %v146, %v145
  %v156 = vpack.c.b16 %v148, %v147
  %165 = vmatpush.bf16.msra.mxu0 %v156
  %166 = vmatpush.bf16.msra.mxu0 %v155
  %167 = vmatpush.bf16.msra.mxu0 %v154
  %168 = vmatpush.bf16.msra.mxu0 %v153
  %169 = vmatpush.bf16.msra.mxu0 %v152
  %170 = vmatpush.bf16.msra.mxu0 %v151
  %171 = vmatpush.bf16.msra.mxu0 %v150
  %172 = vmatpush.bf16.msra.mxu0 %v149
  %173 = vmatmul.bf16.gmra.mxu0 %v96
  %v174 = vpop.f32.mrf.mxu0
  %v175 = vadd.f32 %v115, %v174
  %v176 = vpop.f32.mrf.mxu0
  %177 = vdwg.mxu0
  %178 = vst [vmem:[%s5] sm:$0x3] %v175
  // Predicated region
  $region22: #{inverse_quantity_forward.1} parent=0 // pred_check
    _
  $region23: #{inverse_quantity_forward.1} parent=0 // pred_check_branch
    %180 = sbr.rel (0) target = $region25
  $region24: #{inverse_quantity_forward.1} parent=0 // pred_region
    _
  $region25: #{inverse_quantity_forward.1} parent=0 // pred_fallthru
    _
  // Predicated region
  $region26: #{inverse_quantity_forward.1} parent=0 // pred_check
    _
  $region27: #{inverse_quantity_forward.1} parent=0 // pred_check_branch
    %182 = sbr.rel (0) target = $region29
  $region28: #{inverse_quantity_forward.1} parent=0 // pred_region
    _
  $region29: #{inverse_quantity_forward.1} parent=0 // pred_fallthru
    _

</llo_original>
